<compile_context>
chip_gen: v6e
topology: v6e:2x2x1
jax: 0.10.0
libtpu: 0.0.40
codegen_flags: <defaults>
</compile_context>

<pallas_src>
import jax
import jax.numpy as jnp
from jax.experimental import pallas as pl
from jax.experimental.pallas import tpu as pltpu

_MiB = 1024 * 1024


def _make_flat_prompt_kernel(n_ctx: int, n_suffix: int, ctx_dim: int):
    """Kernel assembling [prefix | ctx | suffix] in a flattened lane-major
    (class, token*dim) layout for a batch of C classes per grid step."""
    ctx_off = ctx_dim                   # lane offset of the ctx segment
    suf_off = (1 + n_ctx) * ctx_dim     # lane offset of the suffix segment
    ctx_w = n_ctx * ctx_dim
    suf_w = n_suffix * ctx_dim

    def kernel(prefix_ref, ctx_ref, suffix_ref, out_ref):
        # prefix_ref: (C, D)
        # ctx_ref:    (1, n_ctx*D)       shared across classes (VMEM-resident)
        # suffix_ref: (C, n_suffix*D)
        # out_ref:    (C, n_tkn*D)
        c_blk = prefix_ref.shape[0]
        # All stores start at lane offsets that are multiples of ctx_dim; with
        # ctx_dim % 128 == 0 (CLIP: 512) each is an unmasked lane-dense vst.
        out_ref[:, pl.ds(0, ctx_dim)] = prefix_ref[...]
        out_ref[:, pl.ds(ctx_off, ctx_w)] = jnp.broadcast_to(
            ctx_ref[...], (c_blk, ctx_w))
        out_ref[:, pl.ds(suf_off, suf_w)] = suffix_ref[...]

    return kernel


def _vmem_budget_and_limit():
    """Per-generation (live-block budget bytes, scoped-VMEM limit, two_tc)."""
    cap = None
    try:
        info = pltpu.get_tpu_info()
        for attr in ("vmem_capacity_bytes", "vmem_size_bytes", "vmem_bytes"):
            v = getattr(info, attr, None)
            if v:
                cap = int(v)
                break
    except Exception:
        cap = None
    if cap is not None and cap <= 80 * _MiB:
        # v7x: 64 MiB VMEM per TC, 2 TCs, ~3.2 TB/s HBM -> modest blocks,
        # conservative scoped limit, keep >=2 grid steps for the 2 TCs.
        return 10 * _MiB, 40 * _MiB, True
    if cap is not None:
        # v5e / v6e: 128 MiB physical VMEM, single TC -> big blocks so the
        # pure-memcpy kernel amortizes the ~0.35us/step overhead and runs
        # near the HBM roofline with few, large DMAs.
        return 16 * _MiB, 64 * _MiB, False
    # Unknown backend: conservative values that are safe on every generation.
    return 8 * _MiB, 32 * _MiB, False


def _pick_class_block(n_cls, n_tkn, n_suffix, ctx_dim, itemsize, budget, two_tc):
    """Classes per grid step (the leading / sublane dim of every block)."""
    # Live bytes per class per step: prefix (1 tok) + suffix + output (n_tkn),
    # x2 for double-buffering.
    per_class = (1 + n_suffix + n_tkn) * ctx_dim * itemsize
    c = max(1, int(budget) // (2 * per_class))
    if two_tc and n_cls >= 2:
        # Keep >= 2 grid steps so dimension_semantics=("parallel",) can shard
        # class batches across the two v7x TensorCores.
        c = min(c, pl.cdiv(n_cls, 2))
    if c >= n_cls:
        return n_cls                      # single full block (== array dim)
    # Tiled case: keep the leading (sublane) dim a multiple of 8 so every
    # full block is (8,128)-aligned and stores stay unmasked.
    c = max(8, (c // 8) * 8)
    # Prefer an exact multiple-of-8 divisor of n_cls (no masked remainder
    # block) when it costs at most ~2x the grid steps.
    d = c
    while d >= 8:
        if n_cls % d == 0 and 2 * d >= c:
            return d
        d -= 8
    return min(c, n_cls)


def prompt_learner_forward(ctx, token_prefix, token_suffix, *, class_block=None):
    """Pallas implementation of PromptLearner.forward(im_features=None).

    ctx:          (n_ctx, ctx_dim)
    token_prefix: (n_cls, 1, ctx_dim)
    token_suffix: (n_cls, n_suffix, ctx_dim)
    returns prompts: (n_cls, 1 + n_ctx + n_suffix, ctx_dim)
    """
    n_ctx, ctx_dim = ctx.shape
    n_cls = token_prefix.shape[0]
    n_suffix = token_suffix.shape[1]
    n_tkn = 1 + n_ctx + n_suffix
    dtype = ctx.dtype
    itemsize = jnp.dtype(dtype).itemsize

    # Match the module: frozen embeddings are kept in the ctx dtype.
    token_prefix = token_prefix.astype(dtype)
    token_suffix = token_suffix.astype(dtype)

    budget, vmem_limit, two_tc = _vmem_budget_and_limit()
    if class_block is None:
        class_block = _pick_class_block(
            n_cls, n_tkn, n_suffix, ctx_dim, itemsize, budget, two_tc)
    c_blk = int(max(1, min(class_block, n_cls)))

    # Lane-major flattened views (free reshapes of contiguous arrays): every
    # kernel store becomes a lane-offset write at a multiple of ctx_dim.
    prefix2d = token_prefix.reshape(n_cls, ctx_dim)
    ctx2d = ctx.reshape(1, n_ctx * ctx_dim)
    suffix2d = token_suffix.reshape(n_cls, n_suffix * ctx_dim)

    kernel = _make_flat_prompt_kernel(n_ctx, n_suffix, ctx_dim)

    out2d = pl.pallas_call(
        kernel,
        out_shape=jax.ShapeDtypeStruct((n_cls, n_tkn * ctx_dim), dtype),
        grid_spec=pl.GridSpec(
            grid=(pl.cdiv(n_cls, c_blk),),
            in_specs=[
                # C classes' SOS embeddings per program.
                pl.BlockSpec((c_blk, ctx_dim), lambda c: (c, 0)),
                # Shared ctx: constant index_map -> stays VMEM-resident.
                # TODO(synk): single-buffer this (pipeline_mode=pl.Buffered(1));
                # the second buffer only wastes a few KiB of VMEM.
                pl.BlockSpec((1, n_ctx * ctx_dim), lambda c: (0, 0)),
                # C classes' class-name + EOS embeddings per program.
                pl.BlockSpec((c_blk, n_suffix * ctx_dim), lambda c: (c, 0)),
            ],
            out_specs=pl.BlockSpec((c_blk, n_tkn * ctx_dim), lambda c: (c, 0)),
        ),
        compiler_params=pltpu.CompilerParams(
            dimension_semantics=("parallel",),
            vmem_limit_bytes=int(vmem_limit),
        ),
    )(prefix2d, ctx2d, suffix2d)

    return out2d.reshape(n_cls, n_tkn, ctx_dim)


def prompt_learner_reference(ctx, token_prefix, token_suffix):
    """Pure-JAX reference matching the PyTorch forward."""
    n_cls = token_prefix.shape[0]
    ctx_b = jnp.broadcast_to(ctx[None, :, :], (n_cls,) + ctx.shape)
    return jnp.concatenate(
        [token_prefix.astype(ctx.dtype), ctx_b, token_suffix.astype(ctx.dtype)],
        axis=1)


if __name__ == "__main__":
    key = jax.random.PRNGKey(0)
    k_ctx, k_pre, k_suf = jax.random.split(key, 3)

    # Case 1: small shapes consistent with the module (ctx_dim lane-aligned).
    n_cls, n_ctx, n_tkn, ctx_dim = 4, 4, 16, 128
    n_suffix = n_tkn - 1 - n_ctx
    dtype = jnp.float32

    # ctx ~ Normal(0, 0.02) as in nn.init.normal_(ctx_vectors, std=0.02).
    ctx = (0.02 * jax.random.normal(k_ctx, (n_ctx, ctx_dim))).astype(dtype)
    # TODO(synk): real module derives prefix/suffix from
    # clip_model.token_embedding over tokenized class prompts; synthetic here.
    token_prefix = jax.random.normal(k_pre, (n_cls, 1, ctx_dim)).astype(dtype)
    token_suffix = jax.random.normal(k_suf, (n_cls, n_suffix, ctx_dim)).astype(dtype)

    prompts = jax.block_until_ready(
        prompt_learner_forward(ctx, token_prefix, token_suffix))
    ref = prompt_learner_reference(ctx, token_prefix, token_suffix)
    assert prompts.shape == (n_cls, n_tkn, ctx_dim), prompts.shape
    assert jnp.array_equal(prompts, ref), "Pallas output mismatch vs reference"

    # Case 2: n_cls not divisible by the class block (exercises the masked
    # remainder block flagged in review), in the bf16 storage dtype.
    n_cls2 = 10
    dtype2 = jnp.bfloat16
    k2_pre, k2_suf = jax.random.split(jax.random.PRNGKey(1), 2)
    ctx2 = ctx.astype(dtype2)
    pre2 = jax.random.normal(k2_pre, (n_cls2, 1, ctx_dim)).astype(dtype2)
    suf2 = jax.random.normal(k2_suf, (n_cls2, n_suffix, ctx_dim)).astype(dtype2)

    out2 = jax.block_until_ready(
        prompt_learner_forward(ctx2, pre2, suf2, class_block=8))
    ref2 = prompt_learner_reference(ctx2, pre2, suf2)
    assert out2.shape == (n_cls2, n_tkn, ctx_dim), out2.shape
    assert jnp.array_equal(out2, ref2), "Pallas output mismatch (remainder block)"

    print("KERNEL_OK")
</pallas_src>

<mosaic_0001>
module attributes {stable_mosaic.version = 11 : i64} {
  func.func @kernel(%arg0: i32, %arg1: memref<4x128xf32, #tpu.memory_space<vmem>>, %arg2: memref<1x512xf32, #tpu.memory_space<vmem>>, %arg3: memref<4x1408xf32, #tpu.memory_space<vmem>>, %arg4: memref<4x2048xf32, #tpu.memory_space<vmem>>) attributes {dimension_semantics = [#tpu.dimension_semantics<parallel>], iteration_bounds = array<i64: 1>, scalar_prefetch = 0 : i64, scratch_operands = 0 : i64, tpu.core_type = #tpu.core_type<tc>, window_params = [{transform_indices = @transform_0, window_bounds = array<i64: 4, 128>}, {pipeline_mode = #tpu.pipeline_mode<synchronous>, transform_indices = @transform_1, window_bounds = array<i64: 1, 512>}, {transform_indices = @transform_2, window_bounds = array<i64: 4, 1408>}, {transform_indices = @transform_3, window_bounds = array<i64: 4, 2048>}]} {
    %c0 = arith.constant 0 : index
    %c0_0 = arith.constant 0 : index
    %0 = vector.load %arg1[%c0, %c0_0] : memref<4x128xf32, #tpu.memory_space<vmem>>, vector<4x128xf32>
    %c0_1 = arith.constant 0 : index
    %c0_2 = arith.constant 0 : index
    %1 = vector.load %arg4[%c0_1, %c0_2] : memref<4x2048xf32, #tpu.memory_space<vmem>>, vector<4x128xf32>
    tpu.vector_store %arg4[%c0_1, %c0_2], %0 {strides = array<i32>} : memref<4x2048xf32, #tpu.memory_space<vmem>>, vector<4x128xf32>,
    %c0_3 = arith.constant 0 : index
    %c0_4 = arith.constant 0 : index
    %2 = vector.load %arg2[%c0_3, %c0_4] : memref<1x512xf32, #tpu.memory_space<vmem>>, vector<1x512xf32>
    %3 = vector.shape_cast %2 : vector<1x512xf32> to vector<1x512xf32>
    %4 = vector.broadcast %3 : vector<1x512xf32> to vector<4x512xf32>
    %c0_5 = arith.constant 0 : index
    %c128 = arith.constant 128 : index
    %5 = vector.load %arg4[%c0_5, %c128] : memref<4x2048xf32, #tpu.memory_space<vmem>>, vector<4x512xf32>
    tpu.vector_store %arg4[%c0_5, %c128], %4 {strides = array<i32>} : memref<4x2048xf32, #tpu.memory_space<vmem>>, vector<4x512xf32>,
    %c0_6 = arith.constant 0 : index
    %c0_7 = arith.constant 0 : index
    %6 = vector.load %arg3[%c0_6, %c0_7] : memref<4x1408xf32, #tpu.memory_space<vmem>>, vector<4x1408xf32>
    %c0_8 = arith.constant 0 : index
    %c640 = arith.constant 640 : index
    %7 = vector.load %arg4[%c0_8, %c640] : memref<4x2048xf32, #tpu.memory_space<vmem>>, vector<4x1408xf32>
    tpu.vector_store %arg4[%c0_8, %c640], %6 {strides = array<i32>} : memref<4x2048xf32, #tpu.memory_space<vmem>>, vector<4x1408xf32>,
    return
  }
  func.func @transform_0(%arg0: i32) -> (i32, i32) {
    %c0_i32 = arith.constant 0 : i32
    %c0_i32_0 = arith.constant 0 : i32
    return %arg0, %c0_i32 : i32, i32
  }
  func.func @transform_1(%arg0: i32) -> (i32, i32) {
    %c0_i32 = arith.constant 0 : i32
    %c0_i32_0 = arith.constant 0 : i32
    %c0_i32_1 = arith.constant 0 : i32
    return %c0_i32, %c0_i32_0 : i32, i32
  }
  func.func @transform_2(%arg0: i32) -> (i32, i32) {
    %c0_i32 = arith.constant 0 : i32
    %c0_i32_0 = arith.constant 0 : i32
    return %arg0, %c0_i32 : i32, i32
  }
  func.func @transform_3(%arg0: i32) -> (i32, i32) {
    %c0_i32 = arith.constant 0 : i32
    %c0_i32_0 = arith.constant 0 : i32
    return %arg0, %c0_i32 : i32, i32
  }
}

</mosaic_0001>

<llo_original>
// kernel: tpu_custom_call.1
$region0: #{tpu_custom_call.1}
  #allocation0 [shape = 'u32[]', space=smem, size = 0x4, offset = 0x4, fixed_abs, tag = 'smem constant byte address 0x4 - core index']
  #allocation1 [shape = 'u32[144,128]{1,0:T(1,128)}', space=vmem, size = 0x12000, scoped, tag = 'internal scratch']
  %s0 = inlined_call_operand.hbm [shape: f32[4,128], index: 0, kind: input, shape index: {}]
  %s1 = inlined_call_operand.hbm [shape: f32[1,512], index: 1, kind: input, shape index: {}]
  %s2 = inlined_call_operand.hbm [shape: f32[4,1408], index: 2, kind: input, shape index: {}]
  %s3 = inlined_call_operand.hbm [shape: f32[4,2048], index: 3, kind: output, shape index: {}]
  %s4 = sld [smem:[#allocation0]]
  $region34: #{tpu_custom_call.1} parent=0
    _
  %s6 = ssub.s32 1, %s4
  %s7 = scalar_select 0, %s6, %s4
  $region1: #{tpu_custom_call.1} parent=0
    #allocation2 [shape = 'u8[2048]{0}', space=vmem, size = 0x800, scoped, tag = 'input window, operand 0, single buffered']
    #allocation3 [shape = 's32[1]{0}', space=sflag, size = 0x4, scoped, tag = 'scoped memory for tpu_custom_call.1']
    #allocation4 [shape = 's32[1]{0}', space=sflag, size = 0x4, scoped, tag = 'scoped memory for tpu_custom_call.1']
    #allocation5 [shape = 'u8[2048]{0}', space=vmem, size = 0x800, scoped, tag = 'input window, operand 1, single buffered']
    #allocation6 [shape = 's32[1]{0}', space=sflag, size = 0x4, scoped, tag = 'scoped memory for tpu_custom_call.1']
    #allocation7 [shape = 'u8[22528]{0}', space=vmem, size = 0x5800, scoped, tag = 'input window, operand 2, single buffered']
    #allocation8 [shape = 'u8[32768]{0}', space=vmem, size = 0x8000, scoped, tag = 'output window, operand 0, single buffered']
    %8 = vsyncpa [#allocation3], 0
    %9 = vsyncpa [#allocation6], 0
    %10 = vsyncpa [#allocation4], 0
    // Predicated region
    $region2: #{tpu_custom_call.1} parent=1 // pred_check
      _
    $region3: #{tpu_custom_call.1} parent=1 // pred_check_branch
      %12 = sbr.rel (0) target = $region5
    $region4: #{tpu_custom_call.1} parent=1 // pred_region
      %s14 = ssub.s32 64, 64
      %15 = vsyncadd [#allocation3], %s14
      %s17 = sshll.u32 [#allocation2], 4
      %s18 = int_to_ptr.vmem [resolvable:$true] %s17
      %20 = dma.hbm_to_vmem [thread:$0]  %s0, 64, %s18, [#allocation3]
    $region5: #{tpu_custom_call.1} parent=1 // pred_fallthru
      _
    // Predicated region
    $region6: #{tpu_custom_call.1} parent=1 // pred_check
      _
    $region7: #{tpu_custom_call.1} parent=1 // pred_check_branch
      %22 = sbr.rel (0) target = $region9
    $region8: #{tpu_custom_call.1} parent=1 // pred_region
      %s24 = ssub.s32 64, 64
      %25 = vsyncadd [#allocation6], %s24
      %s27 = sshll.u32 [#allocation5], 4
      %s28 = int_to_ptr.vmem [resolvable:$true] %s27
      %30 = dma.hbm_to_vmem [thread:$0]  %s1, 64, %s28, [#allocation6]
    $region9: #{tpu_custom_call.1} parent=1 // pred_fallthru
      _
    // Predicated region
    $region10: #{tpu_custom_call.1} parent=1 // pred_check
      _
    $region11: #{tpu_custom_call.1} parent=1 // pred_check_branch
      %32 = sbr.rel (0) target = $region13
    $region12: #{tpu_custom_call.1} parent=1 // pred_region
      %s34 = ssub.s32 704, 704
      %35 = vsyncadd [#allocation6], %s34
      %s37 = sshll.u32 [#allocation7], 4
      %s38 = int_to_ptr.vmem [resolvable:$true] %s37
      %40 = dma.hbm_to_vmem [thread:$0]  %s2, 704, %s38, [#allocation6]
    $region13: #{tpu_custom_call.1} parent=1 // pred_fallthru
      _
    // Predicated region
    $region14: #{tpu_custom_call.1} parent=1 // pred_check
      _
    $region15: #{tpu_custom_call.1} parent=1 // pred_check_branch
      %42 = sbr.rel (0) target = $region17
    $region16: #{tpu_custom_call.1} parent=1 // pred_region
      %43 = dma.done [#allocation3], 64
    $region17: #{tpu_custom_call.1} parent=1 // pred_fallthru
      _
    // Predicated region
    $region18: #{tpu_custom_call.1} parent=1 // pred_check
      _
    $region19: #{tpu_custom_call.1} parent=1 // pred_check_branch
      %45 = sbr.rel (0) target = $region21
    $region20: #{tpu_custom_call.1} parent=1 // pred_region
      %46 = dma.done [#allocation6], 64
    $region21: #{tpu_custom_call.1} parent=1 // pred_fallthru
      _
    // Predicated region
    $region22: #{tpu_custom_call.1} parent=1 // pred_check
      _
    $region23: #{tpu_custom_call.1} parent=1 // pred_check_branch
      %48 = sbr.rel (0) target = $region25
    $region24: #{tpu_custom_call.1} parent=1 // pred_region
      %49 = dma.done [#allocation6], 704
    $region25: #{tpu_custom_call.1} parent=1 // pred_fallthru
      _
    %v50 = vld [vmem:[#allocation2] sm:$0xf]
    %51 = vst [vmem:[#allocation8] sm:$0xf] %v50
    %v52 = vld [vmem:[#allocation5] sm:$0xf]
    %v54 = vlaneseq
    %v55 = vshrl.u32 %v54, 7
    %v56 = vsub.s32 0, %v55
    %v57 = vrot.slane %v52, %v56
    %v58 = vlaneseq
    %v59 = vshrl.u32 %v58, 7
    %v60 = vsub.s32 1, %v59
    %v61 = vrot.slane %v52, %v60
    %v62 = vlaneseq
    %v63 = vshrl.u32 %v62, 7
    %v64 = vsub.s32 2, %v63
    %v65 = vrot.slane %v52, %v64
    %v66 = vlaneseq
    %v67 = vshrl.u32 %v66, 7
    %v68 = vsub.s32 3, %v67
    %v69 = vrot.slane %v52, %v68
    %v70 = vcombine.low %v57, %v61
    %v71 = vcombine.low %v65, %v69
    %74 = vst [vmem:[#allocation8 + $0x4] sm:$0xff] %v70
    %75 = vst [vmem:[#allocation8 + $0xc] sm:$0xff] %v71
    %v76 = vld [vmem:[#allocation7] sm:$0xff]
    %v77 = vld [vmem:[#allocation7 + $0x8] sm:$0xff]
    %v78 = vld [vmem:[#allocation7 + $0x10] sm:$0xff]
    %v79 = vld [vmem:[#allocation7 + $0x18] sm:$0xff]
    %v80 = vld [vmem:[#allocation7 + $0x20] sm:$0xff]
    %v81 = vld [vmem:[#allocation7 + $0x28] sm:$0xf]
    %82 = vst [vmem:[#allocation8 + $0x14] sm:$0xff] %v76
    %83 = vst [vmem:[#allocation8 + $0x1c] sm:$0xff] %v77
    %84 = vst [vmem:[#allocation8 + $0x24] sm:$0xff] %v78
    %85 = vst [vmem:[#allocation8 + $0x2c] sm:$0xff] %v79
    %86 = vst [vmem:[#allocation8 + $0x34] sm:$0xff] %v80
    %87 = vst [vmem:[#allocation8 + $0x3c] sm:$0xf] %v81
    // Predicated region
    $region26: #{tpu_custom_call.1} parent=1 // pred_check
      _
    $region27: #{tpu_custom_call.1} parent=1 // pred_check_branch
      %89 = sbr.rel (0) target = $region29
    $region28: #{tpu_custom_call.1} parent=1 // pred_region
      %s91 = ssub.s32 1024, 1024
      %92 = vsyncadd [#allocation4], %s91
      %s94 = sshll.u32 [#allocation8], 4
      %s95 = int_to_ptr.vmem [resolvable:$true] %s94
      %97 = dma.vmem_to_hbm [thread:$0]  %s95, 1024, %s3, [#allocation4]
    $region29: #{tpu_custom_call.1} parent=1 // pred_fallthru
      _
    // Predicated region
    $region30: #{tpu_custom_call.1} parent=1 // pred_check
      _
    $region31: #{tpu_custom_call.1} parent=1 // pred_check_branch
      %99 = sbr.rel (0) target = $region33
    $region32: #{tpu_custom_call.1} parent=1 // pred_region
      %100 = dma.done [#allocation4], 1024
    $region33: #{tpu_custom_call.1} parent=1 // pred_fallthru
      _
    %101 = vsyncpa [#allocation3], 1
    %102 = vsyncpa [#allocation6], 1
    %103 = vsyncpa [#allocation4], 1

</llo_original>
